<compile_context>
chip_gen: v7x
topology: tpu7x:2x2x1
jax: 0.10.0
libtpu: 0.0.40
codegen_flags: <defaults>
</compile_context>

<pallas_src>
import functools

import jax
import jax.numpy as jnp
from jax.experimental import pallas as pl
from jax.experimental.pallas import tpu as pltpu

_REDUCTION_MODES = ('none', 'mean', 'sum')

_LANES = 128
_BLOCK_BYTES = 1 << 20          # ~1 MiB per operand per block (85% roofline point)


def _tile_rows(rows, itemsize):
    """Rows per block: ~1 MiB of the widest operand, multiple of 32 (covers
    f32/bf16/int8 sublane packing), or the full row count when it is small."""
    tm = max(32, (_BLOCK_BYTES // (_LANES * itemsize)) // 32 * 32)
    return rows if rows <= tm else tm


def _num_parallel_cores():
    """2 only on chips with 2 TensorCores (v7x); 1 elsewhere / when unknown."""
    try:
        kind = jax.devices()[0].device_kind.lower()
    except Exception:
        return 1
    return 2 if ('v7' in kind or '7x' in kind) else 1


# ---------------------------------------------------------------------------
# Pallas kernels
# ---------------------------------------------------------------------------
def _accumulate_block(d, o_ref, acc_ref, *, steps, tm, rows, need_mask):
    """Accumulate one (tm, 128) f32 block into the resident VMEM accumulator;
    reduce + store to the SMEM scalar only on the last step of this slice."""
    j = pl.program_id(1)

    @pl.when(j == 0)
    def _init():
        acc_ref[...] = jnp.zeros_like(acc_ref)

    if need_mask:  # last block may extend past `rows`: mask the garbage rows
        row0 = (pl.program_id(0) * steps + j) * tm
        ridx = row0 + jax.lax.broadcasted_iota(jnp.int32, d.shape, 0)
        d = jnp.where(ridx < rows, d, 0.0)

    acc_ref[...] += d

    @pl.when(j == pl.num_programs(1) - 1)
    def _finalize():
        o_ref[0, 0] = jnp.sum(acc_ref[...])


def _abs_diff_sum_kernel(a_ref, b_ref, o_ref, acc_ref, *, steps, tm, rows, need_mask):
    d = jnp.abs(a_ref[...].astype(jnp.float32) - b_ref[...].astype(jnp.float32))
    _accumulate_block(d, o_ref, acc_ref, steps=steps, tm=tm, rows=rows,
                      need_mask=need_mask)


def _abs_diff_sum_w_kernel(a_ref, b_ref, w_ref, o_ref, acc_ref, *, steps, tm, rows,
                           need_mask):
    d = jnp.abs(a_ref[...].astype(jnp.float32) - b_ref[...].astype(jnp.float32))
    d = d * w_ref[...].astype(jnp.float32)
    _accumulate_block(d, o_ref, acc_ref, steps=steps, tm=tm, rows=rows,
                      need_mask=need_mask)


def _abs_diff_sum_cw_kernel(a_ref, b_ref, w_ref, o_ref, acc_ref, *, tr, hw_rows,
                            need_mask):
    """Channel-broadcast weight: grid = (N, spatial_blocks, C), channel axis
    innermost so the (n, 1, ...) weight block is re-used (DMA elided) across C."""
    j = pl.program_id(1)
    c = pl.program_id(2)

    @pl.when((j == 0) & (c == 0))
    def _init():
        acc_ref[...] = jnp.zeros_like(acc_ref)

    d = jnp.abs(a_ref[0].astype(jnp.float32) - b_ref[0].astype(jnp.float32))
    d = d * w_ref[0].astype(jnp.float32)
    if need_mask:
        ridx = j * tr + jax.lax.broadcasted_iota(jnp.int32, d.shape, 0)
        d = jnp.where(ridx < hw_rows, d, 0.0)
    acc_ref[...] += d

    @pl.when((j == pl.num_programs(1) - 1) & (c == pl.num_programs(2) - 1))
    def _finalize():
        o_ref[0, 0] = jnp.sum(acc_ref[...])


def _abs_diff_kernel(a_ref, b_ref, o_ref):
    d = jnp.abs(a_ref[...].astype(jnp.float32) - b_ref[...].astype(jnp.float32))
    o_ref[...] = d.astype(o_ref.dtype)


def _abs_diff_w_kernel(a_ref, b_ref, w_ref, o_ref):
    d = jnp.abs(a_ref[...].astype(jnp.float32) - b_ref[...].astype(jnp.float32))
    o_ref[...] = (d * w_ref[...].astype(jnp.float32)).astype(o_ref.dtype)


# ---------------------------------------------------------------------------
# Wrappers around pallas_call
# ---------------------------------------------------------------------------
def l1_abs_diff_sum(pred, target, weight=None):
    """sum(|pred - target| [* weight]) with weight (if given) of pred's shape.

    Operands are streamed in their native dtype as a (total//128, 128) slab;
    the <128-element remainder is summed with plain jnp (no whole-array pad)."""
    ops = [pred, target] + ([weight] if weight is not None else [])
    total = int(pred.size)
    rows = total // _LANES
    main = rows * _LANES

    tail_sum = jnp.float32(0.0)
    if main != total:
        t = [o.reshape(-1)[main:].astype(jnp.float32) for o in ops]
        d = jnp.abs(t[0] - t[1])
        if len(t) == 3:
            d = d * t[2]
        tail_sum = jnp.sum(d)
    if rows == 0:
        return tail_sum

    slabs = [o.reshape(-1)[:main].reshape(rows, _LANES) for o in ops]
    itemsize = max(int(s.dtype.itemsize) for s in slabs)
    tm = _tile_rows(rows, itemsize)
    blocks = pl.cdiv(rows, tm)

    npar = _num_parallel_cores()
    if npar > 1 and (blocks % npar != 0 or blocks < 2 * npar):
        npar = 1
    steps = blocks // npar
    need_mask = (blocks * tm != rows)

    kernel = _abs_diff_sum_w_kernel if weight is not None else _abs_diff_sum_kernel
    kernel = functools.partial(kernel, steps=steps, tm=tm, rows=rows,
                               need_mask=need_mask)

    in_specs = [pl.BlockSpec((tm, _LANES), lambda i, j: (i * steps + j, 0))
                for _ in slabs]
    cost = pl.CostEstimate(
        flops=(3 if weight is None else 4) * rows * _LANES,
        transcendentals=0,
        bytes_accessed=sum(int(s.size) * int(s.dtype.itemsize) for s in slabs)
        + npar * 4,
    )
    partials = pl.pallas_call(
        kernel,
        out_shape=jax.ShapeDtypeStruct((npar, 1), jnp.float32),
        grid=(npar, steps),
        in_specs=in_specs,
        out_specs=pl.BlockSpec((1, 1), lambda i, j: (i, 0),
                               memory_space=pltpu.MemorySpace.SMEM),
        scratch_shapes=[pltpu.VMEM((tm, _LANES), jnp.float32)],
        compiler_params=pltpu.CompilerParams(
            dimension_semantics=("parallel", "arbitrary")),
        cost_estimate=cost,
    )(*slabs)
    return jnp.sum(partials) + tail_sum


def l1_abs_diff_sum_channel_weight(pred, target, weight):
    """sum(|pred - target| * weight) for weight of shape (N, 1, H, W), without
    materializing the channel-broadcast weight."""
    N, C = int(pred.shape[0]), int(pred.shape[1])
    hw = int(pred.size) // (N * C)
    if hw % _LANES != 0 or hw == 0:
        # TODO(synk): non-128-divisible spatial size falls back to materializing
        # the channel-broadcast weight (one extra HBM pass) + the dense slab path.
        return l1_abs_diff_sum(pred, target, jnp.broadcast_to(weight, pred.shape))

    hw_rows = hw // _LANES
    p3 = pred.reshape(N * C, hw_rows, _LANES)
    t3 = target.reshape(N * C, hw_rows, _LANES)
    w3 = weight.reshape(N, hw_rows, _LANES)

    itemsize = max(int(x.dtype.itemsize) for x in (p3, t3, w3))
    tr = _tile_rows(hw_rows, itemsize)
    s_steps = pl.cdiv(hw_rows, tr)
    need_mask = (s_steps * tr != hw_rows)

    kernel = functools.partial(_abs_diff_sum_cw_kernel, tr=tr, hw_rows=hw_rows,
                               need_mask=need_mask)
    cost = pl.CostEstimate(
        flops=4 * int(pred.size),
        transcendentals=0,
        bytes_accessed=int(pred.size) * int(p3.dtype.itemsize)
        + int(target.size) * int(t3.dtype.itemsize)
        + int(weight.size) * int(w3.dtype.itemsize) + N * 4,
    )
    partials = pl.pallas_call(
        kernel,
        out_shape=jax.ShapeDtypeStruct((N, 1), jnp.float32),
        grid=(N, s_steps, C),
        in_specs=[
            pl.BlockSpec((1, tr, _LANES), lambda i, j, c: (i * C + c, j, 0)),
            pl.BlockSpec((1, tr, _LANES), lambda i, j, c: (i * C + c, j, 0)),
            pl.BlockSpec((1, tr, _LANES), lambda i, j, c: (i, j, 0)),
        ],
        out_specs=pl.BlockSpec((1, 1), lambda i, j, c: (i, 0),
                               memory_space=pltpu.MemorySpace.SMEM),
        scratch_shapes=[pltpu.VMEM((tr, _LANES), jnp.float32)],
        compiler_params=pltpu.CompilerParams(
            dimension_semantics=("parallel", "arbitrary", "arbitrary")),
        cost_estimate=cost,
    )(p3, t3, w3)
    return jnp.sum(partials)


def l1_abs_diff_elementwise(pred, target, weight=None):
    """|pred - target| [* weight] element-wise (reduction='none'), output in the
    promoted input dtype, lane-dense (rows, 128) tiling."""
    shape = pred.shape
    ops = [pred, target] + ([weight] if weight is not None else [])
    out_dtype = jnp.result_type(*ops)
    total = int(pred.size)

    pad = (-total) % _LANES
    flats = [o.reshape(-1) for o in ops]
    if pad:
        # TODO(synk): a sub-128 remainder forces one padded copy per operand here.
        flats = [jnp.pad(f, (0, pad)) for f in flats]
    rows = (total + pad) // _LANES
    slabs = [f.reshape(rows, _LANES) for f in flats]

    itemsize = max(int(s.dtype.itemsize) for s in slabs)
    tm = _tile_rows(rows, itemsize)
    blocks = pl.cdiv(rows, tm)

    kernel = _abs_diff_w_kernel if weight is not None else _abs_diff_kernel
    cost = pl.CostEstimate(
        flops=(2 if weight is None else 3) * rows * _LANES,
        transcendentals=0,
        bytes_accessed=sum(int(s.size) * int(s.dtype.itemsize) for s in slabs)
        + rows * _LANES * int(jnp.dtype(out_dtype).itemsize),
    )
    out2d = pl.pallas_call(
        kernel,
        out_shape=jax.ShapeDtypeStruct((rows, _LANES), out_dtype),
        grid=(blocks,),
        in_specs=[pl.BlockSpec((tm, _LANES), lambda i: (i, 0)) for _ in slabs],
        out_specs=pl.BlockSpec((tm, _LANES), lambda i: (i, 0)),
        compiler_params=pltpu.CompilerParams(dimension_semantics=("parallel",)),
        cost_estimate=cost,
    )(*slabs)

    flat_out = out2d.reshape(-1)
    if pad:
        flat_out = flat_out[:total]
    return flat_out.reshape(shape)


# ---------------------------------------------------------------------------
# L1Loss.forward
# ---------------------------------------------------------------------------
class L1Loss:
    """L1 (mean absolute error, MAE) loss — Pallas TPU forward pass."""

    def __init__(self, loss_weight=1.0, reduction='mean'):
        if reduction not in _REDUCTION_MODES:
            raise ValueError(f'Unsupported reduction mode: {reduction}. '
                             f'Supported ones are: {list(_REDUCTION_MODES)}')
        self.loss_weight = loss_weight
        self.reduction = reduction

    def __call__(self, pred, target, weight=None, **kwargs):
        return self.forward(pred, target, weight, **kwargs)

    def forward(self, pred, target, weight=None, **kwargs):
        if weight is not None:
            assert weight.ndim == pred.ndim
            assert weight.shape[1] == 1 or weight.shape[1] == pred.shape[1]

        if self.reduction == 'none':
            if weight is not None and weight.shape[1] != pred.shape[1]:
                # Elementwise output is full-size anyway; broadcast is acceptable here.
                weight = jnp.broadcast_to(weight, pred.shape)
            return self.loss_weight * l1_abs_diff_elementwise(pred, target, weight)

        if weight is None:
            s = l1_abs_diff_sum(pred, target)
        elif weight.shape[1] == pred.shape[1]:
            s = l1_abs_diff_sum(pred, target, weight)
        else:  # (N, 1, H, W) weight — kept un-broadcast
            s = l1_abs_diff_sum_channel_weight(pred, target, weight)

        if self.reduction == 'sum':
            return self.loss_weight * s

        # reduction == 'mean' (basicsr weight_reduce_loss normalization)
        if weight is None:
            denom = jnp.float32(pred.size)
        elif weight.shape[1] == pred.shape[1]:
            denom = jnp.sum(weight.astype(jnp.float32))
        else:
            denom = jnp.sum(weight.astype(jnp.float32)) * jnp.float32(pred.shape[1])
        return self.loss_weight * s / denom


if __name__ == "__main__":
    key = jax.random.PRNGKey(0)
    k1, k2, k3 = jax.random.split(key, 3)
    N, C, H, W = 2, 4, 16, 16
    pred = jax.random.uniform(k1, (N, C, H, W), jnp.float32)
    target = jax.random.uniform(k2, (N, C, H, W), jnp.float32)
    weight = jax.random.uniform(k3, (N, C, H, W), jnp.float32)

    # Default config: loss_weight=1.0, reduction='mean'.
    crit = L1Loss(loss_weight=1.0, reduction='mean')
    out = crit(pred, target)
    jax.block_until_ready(out)
    assert out.shape == () and bool(jnp.isfinite(out))
    assert jnp.allclose(out, jnp.mean(jnp.abs(pred - target)), rtol=1e-5, atol=1e-6)

    # sum
    out_sum = L1Loss(reduction='sum')(pred, target)
    assert jnp.allclose(out_sum, jnp.sum(jnp.abs(pred - target)), rtol=1e-5, atol=1e-4)

    # none
    out_none = L1Loss(reduction='none')(pred, target)
    assert out_none.shape == (N, C, H, W)
    assert jnp.allclose(out_none, jnp.abs(pred - target), rtol=1e-5, atol=1e-6)

    # full-shape weight, mean
    out_wmean = L1Loss(reduction='mean')(pred, target, weight=weight)
    ref_wmean = jnp.sum(jnp.abs(pred - target) * weight) / jnp.sum(weight)
    assert jnp.allclose(out_wmean, ref_wmean, rtol=1e-5, atol=1e-5)

    # (N,1,H,W) weight, mean — channel-broadcast weight stays un-materialized.
    cw = jax.random.uniform(jax.random.PRNGKey(1), (N, 1, H, W), jnp.float32)
    out_cw = L1Loss(reduction='mean')(pred, target, weight=cw)
    ref_cw = jnp.sum(jnp.abs(pred - target) * cw) / (jnp.sum(cw) * C)
    assert jnp.allclose(out_cw, ref_cw, rtol=1e-5, atol=1e-5)

    # bf16 inputs stream in native dtype; accumulation is f32 in-kernel.
    pb, tb = pred.astype(jnp.bfloat16), target.astype(jnp.bfloat16)
    out_bf = L1Loss(reduction='mean')(pb, tb)
    ref_bf = jnp.mean(jnp.abs(pb.astype(jnp.float32) - tb.astype(jnp.float32)))
    assert jnp.allclose(out_bf, ref_bf, rtol=1e-4, atol=1e-5)
    nb = L1Loss(reduction='none')(pb, tb)
    assert nb.dtype == jnp.bfloat16

    jax.block_until_ready((out, out_sum, out_none, out_wmean, out_cw, out_bf, nb))
    print("KERNEL_OK")
</pallas_src>

<mosaic_0001>
module attributes {stable_mosaic.version = 11 : i64} {
  func.func @_abs_diff_sum_kernel(%arg0: i32, %arg1: i32, %arg2: memref<16x128xf32, #tpu.memory_space<vmem>>, %arg3: memref<16x128xf32, #tpu.memory_space<vmem>>, %arg4: memref<1x1xf32, #tpu.memory_space<smem>>, %arg5: memref<16x128xf32, #tpu.memory_space<vmem>>) attributes {dimension_semantics = [#tpu.dimension_semantics<parallel>, #tpu.dimension_semantics<arbitrary>], iteration_bounds = array<i64: 1, 1>, scalar_prefetch = 0 : i64, scratch_operands = 1 : i64, tpu.core_type = #tpu.core_type<tc>, window_params = [{transform_indices = @transform_0, window_bounds = array<i64: 16, 128>}, {transform_indices = @transform_1, window_bounds = array<i64: 16, 128>}, {transform_indices = @transform_2, window_bounds = array<i64: 1, 1>}]} {
    %c0 = arith.constant 0 : index
    %c0_0 = arith.constant 0 : index
    %0 = vector.load %arg2[%c0, %c0_0] : memref<16x128xf32, #tpu.memory_space<vmem>>, vector<16x128xf32>
    %c0_1 = arith.constant 0 : index
    %c0_2 = arith.constant 0 : index
    %1 = vector.load %arg3[%c0_1, %c0_2] : memref<16x128xf32, #tpu.memory_space<vmem>>, vector<16x128xf32>
    %2 = arith.subf %0, %1 : vector<16x128xf32>
    %3 = math.absf %2 : vector<16x128xf32>
    %c0_i32 = arith.constant 0 : i32
    %4 = arith.cmpi eq, %arg1, %c0_i32 : i32
    %5 = arith.extui %4 : i1 to i32
    %c0_i32_3 = arith.constant 0 : i32
    %6 = arith.cmpi ne, %5, %c0_i32_3 : i32
    scf.if %6 {
      %cst = arith.constant 0.000000e+00 : f32
      %13 = vector.broadcast %cst : f32 to vector<16x128xf32>
      %c0_10 = arith.constant 0 : index
      %c0_11 = arith.constant 0 : index
      %14 = vector.load %arg5[%c0_10, %c0_11] : memref<16x128xf32, #tpu.memory_space<vmem>>, vector<16x128xf32>
      tpu.vector_store %arg5[%c0_10, %c0_11], %13 {strides = array<i32>} : memref<16x128xf32, #tpu.memory_space<vmem>>, vector<16x128xf32>,
    } else {
    }
    %c0_4 = arith.constant 0 : index
    %c0_5 = arith.constant 0 : index
    %7 = vector.load %arg5[%c0_4, %c0_5] : memref<16x128xf32, #tpu.memory_space<vmem>>, vector<16x128xf32>
    %8 = arith.addf %7, %3 : vector<16x128xf32>
    %c0_6 = arith.constant 0 : index
    %c0_7 = arith.constant 0 : index
    %9 = vector.load %arg5[%c0_6, %c0_7] : memref<16x128xf32, #tpu.memory_space<vmem>>, vector<16x128xf32>
    tpu.vector_store %arg5[%c0_6, %c0_7], %8 {strides = array<i32>} : memref<16x128xf32, #tpu.memory_space<vmem>>, vector<16x128xf32>,
    %c0_i32_8 = arith.constant 0 : i32
    %10 = arith.cmpi eq, %arg1, %c0_i32_8 : i32
    %11 = arith.extui %10 : i1 to i32
    %c0_i32_9 = arith.constant 0 : i32
    %12 = arith.cmpi ne, %11, %c0_i32_9 : i32
    scf.if %12 {
      %c0_10 = arith.constant 0 : index
      %c0_11 = arith.constant 0 : index
      %13 = vector.load %arg5[%c0_10, %c0_11] : memref<16x128xf32, #tpu.memory_space<vmem>>, vector<16x128xf32>
      %14 = vector.shape_cast %13 : vector<16x128xf32> to vector<1x16x128xf32>
      %cst = arith.constant dense<0.000000e+00> : vector<1xf32>
      %15 = vector.multi_reduction <add>, %14, %cst [1, 2] : vector<1x16x128xf32> to vector<1xf32>
      %16 = vector.shape_cast %15 : vector<1xf32> to vector<1x1x1xf32>
      %17 = vector.extract %16[0, 0, 0] : f32 from vector<1x1x1xf32>
      %c0_12 = arith.constant 0 : index
      %c0_13 = arith.constant 0 : index
      %18 = memref.load %arg4[%c0_12, %c0_13] : memref<1x1xf32, #tpu.memory_space<smem>>
      memref.store %17, %arg4[%c0_12, %c0_13] : memref<1x1xf32, #tpu.memory_space<smem>>
    } else {
    }
    return
  }
  func.func @transform_0(%arg0: i32, %arg1: i32) -> (i32, i32) {
    %c1_i32 = arith.constant 1 : i32
    %0 = arith.muli %arg0, %c1_i32 : i32
    %1 = arith.addi %0, %arg1 : i32
    %c0_i32 = arith.constant 0 : i32
    %c0_i32_0 = arith.constant 0 : i32
    return %1, %c0_i32 : i32, i32
  }
  func.func @transform_1(%arg0: i32, %arg1: i32) -> (i32, i32) {
    %c1_i32 = arith.constant 1 : i32
    %0 = arith.muli %arg0, %c1_i32 : i32
    %1 = arith.addi %0, %arg1 : i32
    %c0_i32 = arith.constant 0 : i32
    %c0_i32_0 = arith.constant 0 : i32
    return %1, %c0_i32 : i32, i32
  }
  func.func @transform_2(%arg0: i32, %arg1: i32) -> (i32, i32) {
    %c0_i32 = arith.constant 0 : i32
    %c0_i32_0 = arith.constant 0 : i32
    return %arg0, %c0_i32 : i32, i32
  }
}

</mosaic_0001>

<llo_original>
// kernel: tpu_custom_call.1
$region0: #{tpu_custom_call.1}
  #allocation0 [shape = 'u32[]', space=smem, size = 0x4, offset = 0x4, fixed_abs, tag = 'smem constant byte address 0x4 - core index']
  #allocation1 [shape = 'u32[144,128]{1,0:T(1,128)}', space=vmem, size = 0x12000, scoped, tag = 'internal scratch']
  #allocation2 [shape = 'f32[16,128]{1,0:T(8,128)}', space=vmem, size = 0x2000, scoped, tag = 'scratch operand']
  %s0 = inlined_call_operand.hbm [shape: f32[16,128], index: 0, kind: input, shape index: {}]
  %s1 = inlined_call_operand.hbm [shape: f32[16,128], index: 1, kind: input, shape index: {}]
  %s2 = inlined_call_operand.hbm [shape: f32[1,1], index: 2, kind: output, shape index: {}]
  %s3 = sld [smem:[#allocation0]]
  $region34: #{tpu_custom_call.1} parent=0
    _
  %s5 = ssub.s32 1, %s3
  %s6 = scalar_select 0, %s5, %s3
  $region1: #{tpu_custom_call.1} parent=0
    #allocation3 [shape = 'u8[8192]{0}', space=vmem, size = 0x2000, scoped, tag = 'input window, operand 0, single buffered']
    #allocation4 [shape = 's32[1]{0}', space=sflag, size = 0x4, scoped, tag = 'scoped memory for tpu_custom_call.1']
    #allocation5 [shape = 's32[1]{0}', space=sflag, size = 0x4, scoped, tag = 'scoped memory for tpu_custom_call.1']
    #allocation6 [shape = 'u8[8192]{0}', space=vmem, size = 0x2000, scoped, tag = 'input window, operand 1, single buffered']
    #allocation7 [shape = 's32[1]{0}', space=sflag, size = 0x4, scoped, tag = 'scoped memory for tpu_custom_call.1']
    #allocation8 [shape = 'u8[512]{0}', space=smem, size = 0x200, scoped, tag = 'output window, operand 0, single buffered']
    %7 = vsyncpa [#allocation4], 0
    %8 = vsyncpa [#allocation7], 0
    %9 = vsyncpa [#allocation5], 0
    // Predicated region
    $region2: #{tpu_custom_call.1} parent=1 // pred_check
      _
    $region3: #{tpu_custom_call.1} parent=1 // pred_check_branch
      %11 = sbr.rel (0) target = $region5
    $region4: #{tpu_custom_call.1} parent=1 // pred_region
      %s12 = sadd.s32 0, 0
      %s13 = smul.u32 2, %s12
      %s15 = ssub.s32 256, 256
      %16 = vsyncadd [#allocation4], %s15
      %s17 = smul.addr %s13, 128
      %s18 = scalar_lea.hbm %s0, %s17
      %s19 = sshll.u32 [#allocation3], 4
      %s20 = int_to_ptr.vmem [resolvable:$true] %s19
      %25 = dma.hbm_to_vmem [thread:$0]  %s18, 256, %s20, [#allocation4], 128, 128, 8
    $region5: #{tpu_custom_call.1} parent=1 // pred_fallthru
      _
    // Predicated region
    $region6: #{tpu_custom_call.1} parent=1 // pred_check
      _
    $region7: #{tpu_custom_call.1} parent=1 // pred_check_branch
      %27 = sbr.rel (0) target = $region9
    $region8: #{tpu_custom_call.1} parent=1 // pred_region
      %s28 = sadd.s32 0, 0
      %s29 = smul.u32 2, %s28
      %s31 = ssub.s32 256, 256
      %32 = vsyncadd [#allocation7], %s31
      %s33 = smul.addr %s29, 128
      %s34 = scalar_lea.hbm %s1, %s33
      %s35 = sshll.u32 [#allocation6], 4
      %s36 = int_to_ptr.vmem [resolvable:$true] %s35
      %41 = dma.hbm_to_vmem [thread:$0]  %s34, 256, %s36, [#allocation7], 128, 128, 8
    $region9: #{tpu_custom_call.1} parent=1 // pred_fallthru
      _
    // Predicated region
    $region10: #{tpu_custom_call.1} parent=1 // pred_check
      _
    $region11: #{tpu_custom_call.1} parent=1 // pred_check_branch
      %43 = sbr.rel (0) target = $region13
    $region12: #{tpu_custom_call.1} parent=1 // pred_region
      %44 = dma.done [#allocation4], 256
    $region13: #{tpu_custom_call.1} parent=1 // pred_fallthru
      _
    // Predicated region
    $region14: #{tpu_custom_call.1} parent=1 // pred_check
      _
    $region15: #{tpu_custom_call.1} parent=1 // pred_check_branch
      %46 = sbr.rel (0) target = $region17
    $region16: #{tpu_custom_call.1} parent=1 // pred_region
      %47 = dma.done [#allocation7], 256
    $region17: #{tpu_custom_call.1} parent=1 // pred_fallthru
      _
    %s48 = sadd.s32 0, 0
    %s49 = smul.u32 2, %s48
    %s50 = sadd.s32 0, 0
    %s51 = smul.u32 2, %s50
    %v52 = vld [vmem:[#allocation3] sm:$0xff]
    %v53 = vld [vmem:[#allocation3 + $0x8] sm:$0xff]
    %v54 = vld [vmem:[#allocation6] sm:$0xff]
    %v55 = vld [vmem:[#allocation6 + $0x8] sm:$0xff]
    %v56 = vsub.f32 %v52, %v54
    %v57 = vsub.f32 %v53, %v55
    %v58 = vand.u32 2147483647, %v56
    %v59 = vand.u32 2147483647, %v57
    %p60 = scmp.eq.s32.totalorder 0, 0
    // Predicated region
    $region18: #{tpu_custom_call.1} parent=1 // pred_check
      %p61 = pneg %p60
    $region19: #{tpu_custom_call.1} parent=1 // pred_check_branch
      %63 = sbr.rel (%p61) target = $region21
    $region20: #{tpu_custom_call.1} parent=1 // pred_region
      %64 = vst [vmem:[#allocation2] sm:$0xff] 0.0
      %65 = vst [vmem:[#allocation2 + $0x8] sm:$0xff] 0.0
    $region21: #{tpu_custom_call.1} parent=1 // pred_fallthru
      _
    %v66 = vld [vmem:[#allocation2] sm:$0xff]
    %v67 = vld [vmem:[#allocation2 + $0x8] sm:$0xff]
    %v68 = vadd.f32 %v66, %v58
    %v69 = vadd.f32 %v67, %v59
    %70 = vst [vmem:[#allocation2] sm:$0xff] %v68
    %71 = vst [vmem:[#allocation2 + $0x8] sm:$0xff] %v69
    // Predicated region
    $region22: #{tpu_custom_call.1} parent=1 // pred_check
      %p72 = pneg %p60
    $region23: #{tpu_custom_call.1} parent=1 // pred_check_branch
      %74 = sbr.rel (%p72) target = $region25
    $region24: #{tpu_custom_call.1} parent=1 // pred_region
      %v75 = vld [vmem:[#allocation2] sm:$0xff]
      %v76 = vld [vmem:[#allocation2 + $0x8] sm:$0xff]
      %v77 = vadd.f32 %v75, %v76
      %78 = vadd.xlane.f32.xlu0 %v77
      %v79 = vpop.xlane.xlu0 %78
      %v80 = vrot.slane %v79, 4
      %v81 = vadd.f32 %v79, %v80
      %v82 = vrot.slane %v81, 2
      %v83 = vadd.f32 %v81, %v82
      %v84 = vrot.slane %v83, 1
      %v85 = vadd.f32 %v83, %v84
      %s86 = vtos %v85
      %s87 = scalar_lea.smem [#allocation8], 0
      %88 = sst [smem:[%s87]] %s86
    $region25: #{tpu_custom_call.1} parent=1 // pred_fallthru
      _
    // Predicated region
    $region26: #{tpu_custom_call.1} parent=1 // pred_check
      _
    $region27: #{tpu_custom_call.1} parent=1 // pred_check_branch
      %90 = sbr.rel (0) target = $region29
    $region28: #{tpu_custom_call.1} parent=1 // pred_region
      %s92 = ssub.s32 16, 16
      %93 = vsyncadd [#allocation5], %s92
      %96 = dma.smem_to_hbm [#allocation8], 16, %s2, [#allocation5]
    $region29: #{tpu_custom_call.1} parent=1 // pred_fallthru
      _
    // Predicated region
    $region30: #{tpu_custom_call.1} parent=1 // pred_check
      _
    $region31: #{tpu_custom_call.1} parent=1 // pred_check_branch
      %98 = sbr.rel (0) target = $region33
    $region32: #{tpu_custom_call.1} parent=1 // pred_region
      %99 = dma.done [#allocation5], 16
    $region33: #{tpu_custom_call.1} parent=1 // pred_fallthru
      _
    %100 = sfence
    %101 = vsyncpa [#allocation4], 1
    %102 = vsyncpa [#allocation7], 1
    %103 = vsyncpa [#allocation5], 1

</llo_original>
